<compile_context>
chip_gen: v7x
topology: tpu7x:2x2x1
jax: 0.10.0
libtpu: 0.0.40
codegen_flags: <defaults>
</compile_context>

<pallas_src>
from functools import partial

import jax
import jax.numpy as jnp
import numpy as np
from jax import lax
from jax.experimental import pallas as pl
from jax.experimental.pallas import tpu as pltpu

# Above the scoped defaults (v5e 16 MiB / v6e,v7x 32 MiB), comfortably under
# physical VMEM on every generation (v7x has only 64 MiB physical).
_VMEM_LIMIT = 48 * 1024 * 1024
_CE_TILE_MAX = 8192     # lane-tile cap for the CE/prob kernel
_R_TILE_MAX = 32768     # lane-tile cap for the streaming OHEM reduce


def _round_up(x, m):
    return ((x + m - 1) // m) * m


def _pick_ce_tile(C, HW):
    # Keep double-buffered (C, tile) score blocks plus a few (C, tile) f32
    # temporaries inside a ~24 MiB budget (safe against v7x's 64 MiB VMEM).
    budget = 24 * 1024 * 1024
    per_lane = 8 * 4 * max(1, C)          # ~8 live f32 (C,) columns per lane
    t = budget // per_lane
    t = max(512, min(_CE_TILE_MAX, (t // 128) * 128))
    return max(128, min(t, _round_up(HW, 128)))


def _pick_reduce_tile(n_tot):
    return max(128, min(_R_TILE_MAX, _round_up(n_tot, 128)))


# ----------------------------- kernel bodies ---------------------------------
def _ce_math(ignore_label, n_hw, tile, score_ref, tgt_ref, lane_tile_idx):
    """Shared per-tile CE math. Returns (loss, lse, tgt_logit, valid, in_bounds)."""
    x = score_ref[...].astype(jnp.float32)                       # (C, T)
    t = tgt_ref[...]                                             # (1, T) int32

    # Mask the ragged tail of the last lane tile (no wrapper-side padding).
    pos = lane_tile_idx * tile + lax.broadcasted_iota(jnp.int32, t.shape, 1)
    in_bounds = pos < n_hw
    valid = (t != ignore_label) & in_bounds                      # (1, T)

    m = jnp.max(x, axis=0, keepdims=True)                        # (1, T)
    lse = m + jnp.log(jnp.sum(jnp.exp(x - m), axis=0, keepdims=True))

    # Single one-hot pass with the ignore-removed target (ignore/tail -> 0);
    # the loss for those pixels is masked to 0 below anyway.
    cls = lax.broadcasted_iota(jnp.int32, x.shape, 0)            # (C, T)
    t0 = jnp.where(valid, t, 0)
    tgt_logit = jnp.sum(jnp.where(cls == t0, x, 0.0), axis=0, keepdims=True)

    loss = jnp.where(valid, lse - tgt_logit, 0.0)
    return loss, lse, tgt_logit, valid, in_bounds


def _ce_prob_kernel(ignore_label, n_hw, tile, score_ref, tgt_ref,
                    loss_ref, prob_ref, lsum_ref, cnt_ref):
    loss, lse, tgt_logit, valid, in_bounds = _ce_math(
        ignore_label, n_hw, tile, score_ref, tgt_ref, pl.program_id(1))
    prob = jnp.where(in_bounds, jnp.exp(tgt_logit - lse), 0.0)

    loss_ref[...] = loss
    prob_ref[...] = prob
    # Per-tile partials (distinct output blocks) -> no carried accumulator,
    # both grid axes can be "parallel" (uses both TensorCores on v7x).
    lsum_ref[...] = jnp.sum(loss, keepdims=True)
    cnt_ref[...] = jnp.sum(valid.astype(jnp.float32), keepdims=True)


def _ce_mean_kernel(ignore_label, n_hw, tile, score_ref, tgt_ref, lsum_ref):
    loss, _, _, _, _ = _ce_math(
        ignore_label, n_hw, tile, score_ref, tgt_ref, pl.program_id(1))
    lsum_ref[...] = jnp.sum(loss, keepdims=True)


def _ohem_reduce_kernel(ignore_label, n_tot, tile, thr_ref,
                        loss_ref, prob_ref, tgt_ref, sum_ref, cnt_ref):
    i = pl.program_id(0)
    thr = thr_ref[0]

    lo = loss_ref[...]                                           # (1, T)
    pr = prob_ref[...]
    tg = tgt_ref[...]
    pos = i * tile + lax.broadcasted_iota(jnp.int32, tg.shape, 1)

    sel = (tg != ignore_label) & (pr < thr) & (pos < n_tot)
    sum_ref[...] = jnp.sum(jnp.where(sel, lo, 0.0), keepdims=True)
    cnt_ref[...] = jnp.sum(sel.astype(jnp.float32), keepdims=True)


# ----------------------------- module wrapper ---------------------------------
class OhemCrossEntropyPallas:
    def __init__(self, ignore_label=-1, thres=0.7, min_kept=100000,
                 balance_weights=(0.4, 1.0), sb_weights=1.0):
        self.thresh = float(thres)
        self.min_kept = max(1, int(min_kept))
        self.ignore_label = int(ignore_label)
        self.balance_weights = tuple(balance_weights)   # stand-in: config.LOSS.BALANCE_WEIGHTS
        self.sb_weights = float(sb_weights)             # stand-in: config.LOSS.SB_WEIGHTS

    # ---- pallas_call wrappers -------------------------------------------------
    def _ce_prob_call(self, score_r, tgt_r):
        B, C, HW = score_r.shape
        tile = _pick_ce_tile(C, HW)
        nt = -(-HW // tile)
        kern = partial(_ce_prob_kernel, self.ignore_label, HW, tile)
        row = pl.BlockSpec((None, 1, tile), lambda b, i: (b, 0, i))
        part = pl.BlockSpec((None, None, 1, 1), lambda b, i: (b, i, 0, 0))
        return pl.pallas_call(
            kern,
            out_shape=(jax.ShapeDtypeStruct((B, 1, HW), jnp.float32),
                       jax.ShapeDtypeStruct((B, 1, HW), jnp.float32),
                       jax.ShapeDtypeStruct((B, nt, 1, 1), jnp.float32),
                       jax.ShapeDtypeStruct((B, nt, 1, 1), jnp.float32)),
            grid_spec=pltpu.PrefetchScalarGridSpec(
                num_scalar_prefetch=0,
                grid=(B, nt),
                in_specs=[pl.BlockSpec((None, C, tile), lambda b, i: (b, 0, i)),
                          row],
                out_specs=[row, row, part, part]),
            compiler_params=pltpu.CompilerParams(
                dimension_semantics=("parallel", "parallel"),
                vmem_limit_bytes=_VMEM_LIMIT),
        )(score_r, tgt_r)

    def _ce_mean_call(self, score_r, tgt_r):
        B, C, HW = score_r.shape
        tile = _pick_ce_tile(C, HW)
        nt = -(-HW // tile)
        kern = partial(_ce_mean_kernel, self.ignore_label, HW, tile)
        return pl.pallas_call(
            kern,
            out_shape=jax.ShapeDtypeStruct((B, nt, 1, 1), jnp.float32),
            grid_spec=pltpu.PrefetchScalarGridSpec(
                num_scalar_prefetch=0,
                grid=(B, nt),
                in_specs=[pl.BlockSpec((None, C, tile), lambda b, i: (b, 0, i)),
                          pl.BlockSpec((None, 1, tile), lambda b, i: (b, 0, i))],
                out_specs=pl.BlockSpec((None, None, 1, 1),
                                       lambda b, i: (b, i, 0, 0))),
            compiler_params=pltpu.CompilerParams(
                dimension_semantics=("parallel", "parallel"),
                vmem_limit_bytes=_VMEM_LIMIT),
        )(score_r, tgt_r)

    def _ohem_reduce_call(self, threshold, loss_f, prob_f, tgt_f):
        n_tot = loss_f.shape[1]
        tile = _pick_reduce_tile(n_tot)
        nt = -(-n_tot // tile)
        kern = partial(_ohem_reduce_kernel, self.ignore_label, n_tot, tile)
        thr = jnp.reshape(threshold, (1,)).astype(jnp.float32)
        row = pl.BlockSpec((1, tile), lambda i, thr_ref: (0, i))
        part = pl.BlockSpec((None, 1, 1), lambda i, thr_ref: (i, 0, 0))
        return pl.pallas_call(
            kern,
            out_shape=(jax.ShapeDtypeStruct((nt, 1, 1), jnp.float32),
                       jax.ShapeDtypeStruct((nt, 1, 1), jnp.float32)),
            grid_spec=pltpu.PrefetchScalarGridSpec(
                num_scalar_prefetch=1,
                grid=(nt,),
                in_specs=[row, row, row],
                out_specs=[part, part]),
            compiler_params=pltpu.CompilerParams(
                dimension_semantics=("parallel",),
                vmem_limit_bytes=_VMEM_LIMIT),
        )(thr, loss_f, prob_f, tgt_f)

    # ---- forward paths ----------------------------------------------------------
    @staticmethod
    def _reshape_inputs(score, target):
        B, C, H, W = score.shape
        HW = H * W
        score_r = score.reshape(B, C, HW)                 # free reshape, native dtype
        tgt_r = target.reshape(B, 1, HW).astype(jnp.int32)
        return score_r, tgt_r, B, C, H, W, HW

    def _ce_forward_mean(self, score, target):
        score_r, tgt_r, B, C, H, W, HW = self._reshape_inputs(score, target)
        lsum = self._ce_mean_call(score_r, tgt_r)
        # matches torch: per-pixel CE (ignored -> 0) averaged over ALL pixels
        return jnp.sum(lsum) / jnp.float32(B * HW)

    def _ce_forward_pixel(self, score, target):
        score_r, tgt_r, B, C, H, W, HW = self._reshape_inputs(score, target)
        loss, _, _, _ = self._ce_prob_call(score_r, tgt_r)
        return loss.reshape(B, H, W)

    def _ohem_forward(self, score, target):
        score_r, tgt_r, B, C, H, W, HW = self._reshape_inputs(score, target)
        loss, prob, _, cnt = self._ce_prob_call(score_r, tgt_r)
        n_valid = jnp.sum(cnt).astype(jnp.int32)

        n_tot = B * HW
        loss_f = loss.reshape(1, n_tot)        # contiguous -> free reshapes
        prob_f = prob.reshape(1, n_tot)
        tgt_f = tgt_r.reshape(1, n_tot)

        # TODO(synk): the k-th order statistic (sort) has no exact Pallas
        # equivalent; an in-kernel histogram + cumsum would be far cheaper for
        # multi-megapixel inputs but quantizes the threshold, so the exact
        # jnp.sort is kept here (invalid pixels pushed to +2.0).
        valid = tgt_f[0] != self.ignore_label
        sorted_probs = jnp.sort(jnp.where(valid, prob_f[0], 2.0))
        k = jnp.clip(jnp.minimum(self.min_kept, n_valid - 1), 0, n_tot - 1)
        min_value = sorted_probs[k]
        threshold = jnp.maximum(min_value, jnp.float32(self.thresh))

        sel_sum, sel_cnt = self._ohem_reduce_call(threshold, loss_f, prob_f, tgt_f)
        ohem = jnp.sum(sel_sum) / jnp.sum(sel_cnt)
        return jnp.where(n_valid > 0, ohem, jnp.float32(0.0))

    def __call__(self, scores, target):
        if not isinstance(scores, (list, tuple)):
            scores = [scores]
        if len(self.balance_weights) == len(scores):
            total = jnp.float32(0.0)
            last = len(scores) - 1
            for idx, (w, score) in enumerate(zip(self.balance_weights, scores)):
                if idx == last:
                    a = self._ohem_forward(score, target)
                elif idx == 0:
                    a = self._ce_forward_mean(score, target)     # mean-only aux head
                else:
                    a = self._ce_forward_pixel(score, target)    # per-pixel (rare path)
                total = total + jnp.float32(w) * a
            return total
        elif len(scores) == 1:
            return jnp.float32(self.sb_weights) * self._ohem_forward(scores[0], target)
        else:
            raise ValueError('lengths of prediction and target are not identical!')


# ----------------------------- numpy reference --------------------------------
def _ref_ce_loss_prob(score, target, ignore):
    B, C, H, W = score.shape
    x = np.asarray(score, np.float32).transpose(0, 2, 3, 1).reshape(-1, C)
    t = np.asarray(target).reshape(-1)
    m = x.max(axis=1, keepdims=True)
    lse = m[:, 0] + np.log(np.exp(x - m).sum(axis=1))
    valid = t != ignore
    t0 = np.where(valid, t, 0).astype(np.int64)
    tgt_logit = x[np.arange(x.shape[0]), t0]
    loss = np.where(valid, lse - tgt_logit, 0.0).astype(np.float32)
    prob = np.exp(tgt_logit - lse).astype(np.float32)
    return loss, prob, valid


def _ref_ohem(score, target, ignore, thres, min_kept):
    loss, prob, valid = _ref_ce_loss_prob(score, target, ignore)
    if valid.sum() == 0:
        return 0.0
    pm = np.sort(prob[valid])
    k = min(min_kept, pm.size - 1)
    threshold = max(pm[k], thres)
    sel = valid & (prob < threshold)
    return float(loss[sel].mean()) if sel.sum() > 0 else float('nan')


def _ref_call(scores, target, ignore, thres, min_kept, bw, sbw):
    if not isinstance(scores, (list, tuple)):
        scores = [scores]
    if len(bw) == len(scores):
        total = 0.0
        for idx, (w, s) in enumerate(zip(bw, scores)):
            if idx == len(scores) - 1:
                a = _ref_ohem(s, target, ignore, thres, min_kept)
            else:
                loss, _, _ = _ref_ce_loss_prob(s, target, ignore)
                a = float(loss.mean()) if idx == 0 else loss.reshape(np.asarray(target).shape)
            total = total + w * a
        return total
    elif len(scores) == 1:
        return sbw * _ref_ohem(scores[0], target, ignore, thres, min_kept)
    else:
        raise ValueError('lengths of prediction and target are not identical!')


if __name__ == "__main__":
    key = jax.random.PRNGKey(0)
    k1, k2, k3, k4, k5 = jax.random.split(key, 5)

    # ---- case 1: two heads (aux + ohem), like the HRNet training config -------
    B, C, H, W = 2, 2, 16, 16
    score_extra = jax.random.normal(k1, (B, C, H, W), jnp.float32)
    score_out = jax.random.normal(k2, (B, C, H, W), jnp.float32)
    lab = jax.random.randint(k3, (B, H, W), 0, 4)
    target = jnp.where(lab == 3, 255, jnp.minimum(lab, 1)).astype(jnp.int32)

    crit = OhemCrossEntropyPallas(ignore_label=255, thres=0.7, min_kept=100000,
                                  balance_weights=(0.4, 1.0), sb_weights=1.0)
    out1 = jax.block_until_ready(crit([score_extra, score_out], target))
    ref1 = _ref_call([np.asarray(score_extra), np.asarray(score_out)],
                     np.asarray(target), 255, 0.7, 100000, (0.4, 1.0), 1.0)
    assert np.allclose(np.asarray(out1), ref1, rtol=1e-4, atol=1e-5), (out1, ref1)

    # ---- case 2: single head, ragged lane tail (H*W not a multiple of 128) ----
    B2, C2, H2, W2 = 2, 5, 10, 10
    score_single = jax.random.normal(k4, (B2, C2, H2, W2), jnp.float32)
    lab2 = jax.random.randint(k5, (B2, H2, W2), 0, C2 + 1)
    target2 = jnp.where(lab2 == C2, 255, lab2).astype(jnp.int32)

    crit2 = OhemCrossEntropyPallas(ignore_label=255, thres=0.7, min_kept=25,
                                   balance_weights=(0.4, 1.0), sb_weights=1.0)
    out2 = jax.block_until_ready(crit2(score_single, target2))
    ref2 = _ref_call(np.asarray(score_single), np.asarray(target2),
                     255, 0.7, 25, (0.4, 1.0), 1.0)
    assert np.allclose(np.asarray(out2), ref2, rtol=1e-4, atol=1e-5), (out2, ref2)

    print("KERNEL_OK")
</pallas_src>

<mosaic_0001>
module attributes {stable_mosaic.version = 11 : i64} {
  func.func @_ce_mean_kernel(%arg0: i32, %arg1: i32, %arg2: memref<1x2x256xf32, #tpu.memory_space<vmem>>, %arg3: memref<1x1x256xi32, #tpu.memory_space<vmem>>, %arg4: memref<1x1x1x1xf32, #tpu.memory_space<vmem>>) attributes {dimension_semantics = [#tpu.dimension_semantics<parallel>, #tpu.dimension_semantics<parallel>], iteration_bounds = array<i64: 2, 1>, scalar_prefetch = 0 : i64, scratch_operands = 0 : i64, tpu.core_type = #tpu.core_type<tc>, window_params = [{transform_indices = @transform_0, window_bounds = array<i64: 1, 2, 256>}, {transform_indices = @transform_1, window_bounds = array<i64: 1, 1, 256>}, {transform_indices = @transform_2, window_bounds = array<i64: 1, 1, 1, 1>}]} {
    %c0 = arith.constant 0 : index
    %c0_0 = arith.constant 0 : index
    %c0_1 = arith.constant 0 : index
    %0 = vector.load %arg2[%c0, %c0_0, %c0_1] : memref<1x2x256xf32, #tpu.memory_space<vmem>>, vector<1x2x256xf32>
    %1 = vector.shape_cast %0 : vector<1x2x256xf32> to vector<2x256xf32>
    %c0_2 = arith.constant 0 : index
    %c0_3 = arith.constant 0 : index
    %c0_4 = arith.constant 0 : index
    %2 = vector.load %arg3[%c0_2, %c0_3, %c0_4] : memref<1x1x256xi32, #tpu.memory_space<vmem>>, vector<1x1x256xi32>
    %3 = vector.shape_cast %2 : vector<1x1x256xi32> to vector<1x256xi32>
    %c256_i32 = arith.constant 256 : i32
    %4 = arith.muli %arg1, %c256_i32 : i32
    %5 = tpu.iota {dimensions = array<i32: 1>} : vector<1x256xi32>
    %6 = vector.broadcast %4 : i32 to vector<1x256xi32>
    %7 = arith.addi %6, %5 : vector<1x256xi32>
    %c256_i32_5 = arith.constant 256 : i32
    %8 = vector.broadcast %c256_i32_5 : i32 to vector<1x256xi32>
    %9 = arith.cmpi slt, %7, %8 : vector<1x256xi32>
    %c255_i32 = arith.constant 255 : i32
    %10 = vector.broadcast %c255_i32 : i32 to vector<1x256xi32>
    %11 = arith.cmpi ne, %3, %10 : vector<1x256xi32>
    %12 = arith.andi %11, %9 : vector<1x256xi1>
    %cst = arith.constant dense<0xFF800000> : vector<256xf32>
    %13 = vector.multi_reduction <maximumf>, %1, %cst [0] : vector<2x256xf32> to vector<256xf32>
    %14 = vector.shape_cast %13 : vector<256xf32> to vector<1x256xf32>
    %15 = vector.broadcast %14 : vector<1x256xf32> to vector<2x256xf32>
    %16 = arith.subf %1, %15 : vector<2x256xf32>
    %17 = math.exp %16 : vector<2x256xf32>
    %cst_6 = arith.constant dense<0.000000e+00> : vector<256xf32>
    %18 = vector.multi_reduction <add>, %17, %cst_6 [0] : vector<2x256xf32> to vector<256xf32>
    %19 = vector.shape_cast %18 : vector<256xf32> to vector<1x256xf32>
    %20 = math.log %19 : vector<1x256xf32>
    %21 = arith.addf %14, %20 : vector<1x256xf32>
    %22 = tpu.iota {dimensions = array<i32: 0>} : vector<2x256xi32>
    %c0_i32 = arith.constant 0 : i32
    %23 = vector.broadcast %c0_i32 : i32 to vector<1x256xi32>
    %24 = arith.select %12, %3, %23 : vector<1x256xi1>, vector<1x256xi32>
    %25 = vector.broadcast %24 : vector<1x256xi32> to vector<2x256xi32>
    %26 = arith.cmpi eq, %22, %25 : vector<2x256xi32>
    %cst_7 = arith.constant 0.000000e+00 : f32
    %27 = vector.broadcast %cst_7 : f32 to vector<2x256xf32>
    %28 = arith.select %26, %1, %27 : vector<2x256xi1>, vector<2x256xf32>
    %cst_8 = arith.constant dense<0.000000e+00> : vector<256xf32>
    %29 = vector.multi_reduction <add>, %28, %cst_8 [0] : vector<2x256xf32> to vector<256xf32>
    %30 = vector.shape_cast %29 : vector<256xf32> to vector<1x256xf32>
    %31 = arith.subf %21, %30 : vector<1x256xf32>
    %cst_9 = arith.constant 0.000000e+00 : f32
    %32 = vector.broadcast %cst_9 : f32 to vector<1x256xf32>
    %33 = arith.select %12, %31, %32 : vector<1x256xi1>, vector<1x256xf32>
    %34 = vector.shape_cast %33 : vector<1x256xf32> to vector<1x1x256xf32>
    %cst_10 = arith.constant dense<0.000000e+00> : vector<1xf32>
    %35 = vector.multi_reduction <add>, %34, %cst_10 [1, 2] : vector<1x1x256xf32> to vector<1xf32>
    %36 = vector.shape_cast %35 : vector<1xf32> to vector<1x1x1xf32>
    %37 = vector.extract %36[0, 0, 0] : f32 from vector<1x1x1xf32>
    %38 = vector.broadcast %37 : f32 to vector<1x1xf32>
    %c0_11 = arith.constant 0 : index
    %c0_12 = arith.constant 0 : index
    %c0_13 = arith.constant 0 : index
    %c0_14 = arith.constant 0 : index
    %39 = vector.load %arg4[%c0_11, %c0_12, %c0_13, %c0_14] : memref<1x1x1x1xf32, #tpu.memory_space<vmem>>, vector<1x1x1x1xf32>
    %40 = vector.shape_cast %39 : vector<1x1x1x1xf32> to vector<1x1xf32>
    %41 = vector.shape_cast %38 : vector<1x1xf32> to vector<1x1x1x1xf32>
    tpu.vector_store %arg4[%c0_11, %c0_12, %c0_13, %c0_14], %41 {strides = array<i32>} : memref<1x1x1x1xf32, #tpu.memory_space<vmem>>, vector<1x1x1x1xf32>,
    return
  }
  func.func @transform_0(%arg0: i32, %arg1: i32) -> (i32, i32, i32) {
    %c0_i32 = arith.constant 0 : i32
    %c0_i32_0 = arith.constant 0 : i32
    return %arg0, %c0_i32, %arg1 : i32, i32, i32
  }
  func.func @transform_1(%arg0: i32, %arg1: i32) -> (i32, i32, i32) {
    %c0_i32 = arith.constant 0 : i32
    %c0_i32_0 = arith.constant 0 : i32
    return %arg0, %c0_i32, %arg1 : i32, i32, i32
  }
  func.func @transform_2(%arg0: i32, %arg1: i32) -> (i32, i32, i32, i32) {
    %c0_i32 = arith.constant 0 : i32
    %c0_i32_0 = arith.constant 0 : i32
    %c0_i32_1 = arith.constant 0 : i32
    return %arg0, %arg1, %c0_i32, %c0_i32_0 : i32, i32, i32, i32
  }
}

</mosaic_0001>

<llo_original>
// kernel: tpu_custom_call.1
$region0: #{tpu_custom_call.1}
  #allocation0 [shape = 'u32[]', space=smem, size = 0x4, offset = 0x4, fixed_abs, tag = 'smem constant byte address 0x4 - core index']
  #allocation1 [shape = 'u32[144,128]{1,0:T(1,128)}', space=vmem, size = 0x12000, scoped, tag = 'internal scratch']
  %s0 = inlined_call_operand.hbm [shape: f32[2,2,256], index: 0, kind: input, shape index: {}]
  %s1 = inlined_call_operand.hbm [shape: s32[2,1,256], index: 1, kind: input, shape index: {}]
  %s2 = inlined_call_operand.vmem [shape: f32[2,1,1,1], index: 2, kind: output, shape index: {}]
  %s3 = sld [smem:[#allocation0]]
  $region49: #{tpu_custom_call.1} parent=0
    _
  %s5 = ssub.s32 1, %s3
  %s6 = scalar_select 0, %s5, %s3
  $region1: #{tpu_custom_call.1} parent=0
    #allocation2 [shape = 'u8[4096]{0}', space=vmem, size = 0x1000, scoped, tag = 'input window, operand 0']
    #allocation3 [shape = 's32[2]{0}', space=sflag, size = 0x8, scoped, tag = 'scoped memory for tpu_custom_call.1']
    #allocation4 [shape = 'u8[2048]{0}', space=vmem, size = 0x800, scoped, tag = 'input window, operand 1']
    #allocation5 [shape = 's32[2]{0}', space=sflag, size = 0x8, scoped, tag = 'scoped memory for tpu_custom_call.1']
    %7 = vsyncpa [#allocation3], 0
    %s8 = scalar_lea.sflag [#allocation3], 1
    %9 = vsyncpa %s8, 0
    %10 = vsyncpa [#allocation5], 0
    %s11 = scalar_lea.sflag [#allocation5], 1
    %12 = vsyncpa %s11, 0
    loop: start=0, step=1, limit=4
    $region2: #{tpu_custom_call.1} parent=1 // loop_pre_header
      _
    $region3: #{tpu_custom_call.1} parent=1 // loop_header
      %s14 = sphi 0, %s18
      %p15 = scmp.ge.s32.totalorder %s14, 4
      %s21 = sphi 0, %s33
      %s22 = sphi 0, %s29
      %s23 = sphi 0, %s21
      %s24 = sphi 0, %s22
      %s25 = sphi 0, %s23
      %s26 = sphi 0, %s24
      %s38 = sphi 0, %s40
      %s41 = sphi 0, %s38
      %s42 = sphi 0, %s41
      %s58 = sphi 0, %s42
      %s66 = sphi 0, %s68
      %s69 = sphi 0, %s66
      %s70 = sphi 0, %s69
      %s86 = sphi 0, %s70
      %s94 = sphi 0, %s96
      %s97 = sphi 0, %s94
      %s98 = sphi 0, %s97
      %s114 = sphi 0, %s98
    $region4: #{tpu_custom_call.1} parent=1 // loop_header_branch
      %17 = sbr.rel (%p15) target = $region8
    $region5: #{tpu_custom_call.1} parent=1 // loop_body
      %s19 = ssub.s32 %s14, 1
      %s20 = ssub.s32 %s14, 2
      %s27 = sadd.s32 1, %s22
      %p28 = scmp.ge.s32.totalorder %s27, 1
      %s29 = scalar_select %p28, 0, %s27
      %s30 = sadd.s32 1, %s21
      %s31 = scalar_select %p28, %s30, %s21
      %p32 = scmp.ge.s32.totalorder %s31, 2
      %s33 = scalar_select %p32, 0, %s31
      %s34 = ssub.s32 %s21, %s33
      %s35 = ssub.s32 %s22, %s29
      %s36 = sor.u32 %s34, %s35
      %p37 = scmp.eq.s32.totalorder %s36, 0
      %s39 = sadd.s32 %s38, 1
      %s40 = scalar_select %p37, %s38, %s39
      %p43 = pneg %p37
      %p44 = scmp.eq.s32.totalorder %s14, 1
      %p45 = por %p43, %p44
      %p46 = scmp.ne.s32.totalorder %s38, %s41
      %p47 = scmp.eq.s32.totalorder %s14, 0
      %p48 = por %p46, %p47
      %p49 = scmp.ne.s32.totalorder %s38, %s41
      %p50 = scmp.eq.s32.totalorder %s19, 1
      %p51 = por %p49, %p50
      %p52 = scmp.ne.s32.totalorder %s41, %s42
      %p53 = scmp.eq.s32.totalorder %s19, 0
      %p54 = por %p52, %p53
      %p55 = scmp.ne.s32.totalorder %s41, %s42
      %p56 = scmp.eq.s32.totalorder %s20, 1
      %p57 = por %p55, %p56
      %p59 = scmp.ne.s32.totalorder %s42, %s58
      %p60 = scmp.eq.s32.totalorder %s20, 0
      %p61 = por %p59, %p60
      %s62 = ssub.s32 %s21, %s33
      %s63 = ssub.s32 %s22, %s29
      %s64 = sor.u32 %s62, %s63
      %p65 = scmp.eq.s32.totalorder %s64, 0
      %s67 = sadd.s32 %s66, 1
      %s68 = scalar_select %p65, %s66, %s67
      %p71 = pneg %p65
      %p72 = scmp.eq.s32.totalorder %s14, 1
      %p73 = por %p71, %p72
      %p74 = scmp.ne.s32.totalorder %s66, %s69
      %p75 = scmp.eq.s32.totalorder %s14, 0
      %p76 = por %p74, %p75
      %p77 = scmp.ne.s32.totalorder %s66, %s69
      %p78 = scmp.eq.s32.totalorder %s19, 1
      %p79 = por %p77, %p78
      %p80 = scmp.ne.s32.totalorder %s69, %s70
      %p81 = scmp.eq.s32.totalorder %s19, 0
      %p82 = por %p80, %p81
      %p83 = scmp.ne.s32.totalorder %s69, %s70
      %p84 = scmp.eq.s32.totalorder %s20, 1
      %p85 = por %p83, %p84
      %p87 = scmp.ne.s32.totalorder %s70, %s86
      %p88 = scmp.eq.s32.totalorder %s20, 0
      %p89 = por %p87, %p88
      %s90 = ssub.s32 %s21, %s33
      %s91 = ssub.s32 %s22, %s29
      %s92 = sor.u32 %s90, %s91
      %p93 = scmp.eq.s32.totalorder %s92, 0
      %s95 = sadd.s32 %s94, 1
      %s96 = scalar_select %p93, %s94, %s95
      %p99 = pneg %p93
      %p100 = scmp.eq.s32.totalorder %s14, 1
      %p101 = por %p99, %p100
      %p102 = scmp.ne.s32.totalorder %s94, %s97
      %p103 = scmp.eq.s32.totalorder %s14, 0
      %p104 = por %p102, %p103
      %p105 = scmp.ne.s32.totalorder %s94, %s97
      %p106 = scmp.eq.s32.totalorder %s19, 1
      %p107 = por %p105, %p106
      %p108 = scmp.ne.s32.totalorder %s97, %s98
      %p109 = scmp.eq.s32.totalorder %s19, 0
      %p110 = por %p108, %p109
      %p111 = scmp.ne.s32.totalorder %s97, %s98
      %p112 = scmp.eq.s32.totalorder %s20, 1
      %p113 = por %p111, %p112
      %p115 = scmp.ne.s32.totalorder %s98, %s114
      %p116 = scmp.eq.s32.totalorder %s20, 0
      %p117 = por %p115, %p116
      %p118 = scmp.le.s32.totalorder 1, %s14
      %p119 = scmp.lt.s32.totalorder %s14, 3
      %p120 = pnand %p118, %p119
      %p121 = pneg %p120
      // Predicated region
      $region9: #{tpu_custom_call.1} parent=5 // pred_check
        _
      $region10: #{tpu_custom_call.1} parent=5 // pred_check_branch
        %123 = sbr.rel (%p120) target = $region12
      $region11: #{tpu_custom_call.1} parent=5 // pred_region
        %s124 = ssub.s32 %s14, 1
      $region12: #{tpu_custom_call.1} parent=5 // pred_fallthru
        _
      %p125 = scmp.lt.s32.totalorder %s14, 2
      // Predicated region
      $region13: #{tpu_custom_call.1} parent=5 // pred_check
        %p126 = pneg %p125
      $region14: #{tpu_custom_call.1} parent=5 // pred_check_branch
        %128 = sbr.rel (%p126) target = $region16
      $region15: #{tpu_custom_call.1} parent=5 // pred_region
        // Predicated region
        $region17: #{tpu_custom_call.1} parent=15 // pred_check
          %p129 = pneg %p48
        $region18: #{tpu_custom_call.1} parent=15 // pred_check_branch
          %131 = sbr.rel (%p129) target = $region20
        $region19: #{tpu_custom_call.1} parent=15 // pred_region
          %s132 = sand.u32 %s38, 1
          %s133 = scalar_lea.sflag [#allocation3], %s132
          %s134 = sand.u32 %s38, 1
          %s135 = smul.addr %s134, 4
          %s136 = scalar_lea.vmem [#allocation2], %s135
          %s137 = smul.u32 2, %s22
          %s139 = ssub.s32 64, 64
          %140 = vsyncadd %s133, %s139
          %s141 = smul.addr %s21, 2
          %s142 = sadd.s32 %s137, %s141
          %s143 = smul.addr %s142, 32
          %s144 = scalar_lea.hbm %s0, %s143
          %s146 = sshll.u32 %s136, 4
          %s147 = int_to_ptr.vmem [resolvable:$true] %s146
          %149 = dma.hbm_to_vmem [thread:$0]  %s144, 64, %s147, %s133
        $region20: #{tpu_custom_call.1} parent=15 // pred_fallthru
          _
        // Predicated region
        $region21: #{tpu_custom_call.1} parent=15 // pred_check
          %p150 = pneg %p76
        $region22: #{tpu_custom_call.1} parent=15 // pred_check_branch
          %152 = sbr.rel (%p150) target = $region24
        $region23: #{tpu_custom_call.1} parent=15 // pred_region
          %s153 = sand.u32 %s66, 1
          %s154 = scalar_lea.sflag [#allocation5], %s153
          %s155 = sand.u32 %s66, 1
          %s156 = smul.addr %s155, 2
          %s157 = scalar_lea.vmem [#allocation4], %s156
          %s158 = smul.u32 2, %s22
          %s160 = ssub.s32 32, 32
          %161 = vsyncadd %s154, %s160
          %s162 = smul.addr %s21, 2
          %s163 = sadd.s32 %s158, %s162
          %s164 = smul.addr %s163, 16
          %s165 = scalar_lea.hbm %s1, %s164
          %s167 = sshll.u32 %s157, 4
          %s168 = int_to_ptr.vmem [resolvable:$true] %s167
          %170 = dma.hbm_to_vmem [thread:$0]  %s165, 32, %s168, %s154
        $region24: #{tpu_custom_call.1} parent=15 // pred_fallthru
          _
      $region16: #{tpu_custom_call.1} parent=5 // pred_fallthru
        _
      %p171 = scmp.le.s32.totalorder 1, %s14
      %p172 = scmp.lt.s32.totalorder %s14, 3
      %p173 = pnand %p171, %p172
      %p174 = pneg %p173
      // Predicated region
      $region25: #{tpu_custom_call.1} parent=5 // pred_check
        _
      $region26: #{tpu_custom_call.1} parent=5 // pred_check_branch
        %176 = sbr.rel (%p173) target = $region28
      $region27: #{tpu_custom_call.1} parent=5 // pred_region
        %s177 = ssub.s32 %s14, 1
        %s178 = sand.u32 %s41, 1
        %s179 = scalar_lea.sflag [#allocation3], %s178
        %s180 = sand.u32 %s41, 1
        %s181 = smul.addr %s180, 4
        %s182 = scalar_lea.vmem [#allocation2], %s181
        // Predicated region
        $region29: #{tpu_custom_call.1} parent=27 // pred_check
          %p183 = pneg %p54
        $region30: #{tpu_custom_call.1} parent=27 // pred_check_branch
          %185 = sbr.rel (%p183) target = $region32
        $region31: #{tpu_custom_call.1} parent=27 // pred_region
          %186 = dma.done %s179, 64
        $region32: #{tpu_custom_call.1} parent=27 // pred_fallthru
          _
        %s187 = sand.u32 %s69, 1
        %s188 = scalar_lea.sflag [#allocation5], %s187
        %s189 = sand.u32 %s69, 1
        %s190 = smul.addr %s189, 2
        %s191 = scalar_lea.vmem [#allocation4], %s190
        // Predicated region
        $region33: #{tpu_custom_call.1} parent=27 // pred_check
          %p192 = pneg %p82
        $region34: #{tpu_custom_call.1} parent=27 // pred_check_branch
          %194 = sbr.rel (%p192) target = $region36
        $region35: #{tpu_custom_call.1} parent=27 // pred_region
          %195 = dma.done %s188, 32
        $region36: #{tpu_custom_call.1} parent=27 // pred_fallthru
          _
        %s196 = sand.u32 %s41, 1
        %s197 = scalar_lea.sflag [#allocation3], %s196
        %s198 = sand.u32 %s41, 1
        %s199 = smul.addr %s198, 4
        %s200 = scalar_lea.vmem [#allocation2], %s199
        %p201 = pneg %p54
        %p202 = pneg %p51
        %s203 = sand.u32 %s69, 1
        %s204 = scalar_lea.sflag [#allocation5], %s203
        %s205 = sand.u32 %s69, 1
        %s206 = smul.addr %s205, 2
        %s207 = scalar_lea.vmem [#allocation4], %s206
        %p208 = pneg %p82
        %p209 = pneg %p79
        %p210 = pneg %p110
        %p211 = pneg %p107
        %p212 = scmp.lt.s32.totalorder %s23, 1
        %s213 = scalar_select %p212, %s23, 1
        %p214 = scmp.lt.s32.totalorder %s24, 0
        %s215 = scalar_select %p214, %s24, 0
        %s216 = sadd.s32 %s215, %s213
        %s217 = scalar_lea.vmem %s2, %s216
        %s218 = smul.u32 2, %s24
        %s219 = smul.u32 2, %s24
        %p220 = scmp.lt.s32.totalorder %s23, 1
        %s221 = scalar_select %p220, %s23, 1
        %p222 = scmp.lt.s32.totalorder %s24, 0
        %s223 = scalar_select %p222, %s24, 0
        %s224 = sadd.s32 %s223, %s221
        %s225 = scalar_lea.vmem %s2, %s224
        %v226 = vld [vmem:[%s182] sm:$0xf]
        %v227 = vld [vmem:[%s191] sm:$0x3]
        %s228 = smul.u32 %s24, 256
        %v229 = vlaneseq
        %v230 = vand.u32 %v229, 127
        %v231 = vadd.s32 %v230, 128
        %v232 = vstv %s228
        %v233 = vadd.s32 %v232, %v230
        %v234 = vadd.s32 %v232, %v231
        %vm235 = vcmp.lt.s32.totalorder %v233, 256
        %vm236 = vcmp.lt.s32.totalorder %v234, 256
        %vm237 = vcmp.ne.s32.totalorder %v227, 255
        %v238 = vsel %vm235, 1, 0
        %v239 = vsel %vm236, 1, 0
        %v240 = vcombine.low %v238, %v239
        %v242 = vunpack.c.l.s4 1966171168
        %v243 = vunpack.c.0.s8 %v242
        %v244 = vlaneseq
        %v245 = vshrl.u32 %v244, 7
        %v246 = vsub.s32 %v243, %v245
        %v247 = vrot.slane %v240, %v246
        %v249 = vunpack.c.l.s4 1966171168
        %v250 = vunpack.c.0.s8 %v249
        %v251 = vlaneseq
        %v252 = vshrl.u32 %v251, 7
        %v253 = vsub.s32 %v250, %v252
        %v254 = vrot.slane %v247, %v253
        %vm255 = vcmp.ne.s32.totalorder %v254, 0
        %vm256 = vmand %vm237, %vm255
        %v259 = vunpack.c.l.s4 1983009808
        %v260 = vunpack.c.0.s8 %v259
        %v261 = vlaneseq
        %v262 = vshrl.u32 %v261, 7
        %v263 = vsub.s32 %v260, %v262
        %v264 = vrot.slane %v226, %v263
        %v265 = vcombine.high %v264, %v264
        %vm268 = vcmask 1041408
        %v269 = vsel %vm268, %v264, -inf
        %v270 = vrot.slane %v269, 4
        %v271 = vmax.f32 %v269, %v270
        %v272 = vrot.slane %v271, 2
        %v273 = vmax.f32 %v271, %v272
        %v274 = vrot.slane %v273, 1
        %v275 = vmax.f32 %v273, %v274
        %v276 = vsel %vm268, %v265, -inf
        %v277 = vrot.slane %v276, 4
        %v278 = vmax.f32 %v276, %v277
        %v279 = vrot.slane %v278, 2
        %v280 = vmax.f32 %v278, %v279
        %v281 = vrot.slane %v280, 1
        %v282 = vmax.f32 %v280, %v281
        %v285 = vcombine.low %v275, %v282
        %v287 = vunpack.c.l.s4 1983009808
        %v288 = vunpack.c.0.s8 %v287
        %v289 = vlaneseq
        %v290 = vshrl.u32 %v289, 7
        %v291 = vsub.s32 %v288, %v290
        %v292 = vrot.slane %v285, %v291
        %v294 = vsub.f32 %v226, %v292
        %v295 = vmul.f32 %v294, 1.442695
        %v296 = vpow.pop %v295
        %v299 = vunpack.c.l.s4 1983009808
        %v300 = vunpack.c.0.s8 %v299
        %v301 = vlaneseq
        %v302 = vshrl.u32 %v301, 7
        %v303 = vsub.s32 %v300, %v302
        %v304 = vrot.slane %v296, %v303
        %v305 = vcombine.high %v304, %v304
        %v308 = vsel %vm268, %v304, 0.0
        %v309 = vrot.slane %v308, 4
        %v310 = vadd.f32 %v308, %v309
        %v311 = vrot.slane %v310, 2
        %v312 = vadd.f32 %v310, %v311
        %v313 = vrot.slane %v312, 1
        %v314 = vadd.f32 %v312, %v313
        %v315 = vsel %vm268, %v305, 0.0
        %v316 = vrot.slane %v315, 4
        %v317 = vadd.f32 %v315, %v316
        %v318 = vrot.slane %v317, 2
        %v319 = vadd.f32 %v317, %v318
        %v320 = vrot.slane %v319, 1
        %v321 = vadd.f32 %v319, %v320
        %v322 = vlog2.pop %v314
        %v323 = vmul.f32 %v322, 0.6931472
        %v324 = vlog2.pop %v321
        %v325 = vmul.f32 %v324, 0.6931472
        %v326 = vadd.f32 %v275, %v323
        %v327 = vadd.f32 %v282, %v325
        %v328 = vlaneseq
        %v329 = vshrl.u32 %v328, 7
        %v330 = vsel %vm256, %v227, 0
        %v331 = vlaneseq
        %v332 = vshrl.u32 %v331, 7
        %v333 = vsub.s32 0, %v332
        %v334 = vrot.slane %v330, %v333
        %v335 = vlaneseq
        %v336 = vshrl.u32 %v335, 7
        %v337 = vsub.s32 1, %v336
        %v338 = vrot.slane %v330, %v337
        %vm339 = vcmp.eq.s32.totalorder %v329, %v334
        %vm340 = vcmp.eq.s32.totalorder %v329, %v338
        %v341 = vsel %vm339, %v264, 0.0
        %v342 = vsel %vm340, %v265, 0.0
        %v343 = vsel %vm268, %v341, 0.0
        %v344 = vrot.slane %v343, 4
        %v345 = vadd.f32 %v343, %v344
        %v346 = vrot.slane %v345, 2
        %v347 = vadd.f32 %v345, %v346
        %v348 = vrot.slane %v347, 1
        %v349 = vadd.f32 %v347, %v348
        %v350 = vsel %vm268, %v342, 0.0
        %v351 = vrot.slane %v350, 4
        %v352 = vadd.f32 %v350, %v351
        %v353 = vrot.slane %v352, 2
        %v354 = vadd.f32 %v352, %v353
        %v355 = vrot.slane %v354, 1
        %v356 = vadd.f32 %v354, %v355
        %v357 = vsub.f32 %v326, %v349
        %v358 = vsub.f32 %v327, %v356
        %v361 = vcombine.low %v357, %v358
        %v363 = vunpack.c.l.s4 1966171168
        %v364 = vunpack.c.0.s8 %v363
        %v365 = vlaneseq
        %v366 = vshrl.u32 %v365, 7
        %v367 = vsub.s32 %v364, %v366
        %v368 = vrot.slane %v361, %v367
        %v370 = vunpack.c.l.s4 1966171168
        %v371 = vunpack.c.0.s8 %v370
        %v372 = vlaneseq
        %v373 = vshrl.u32 %v372, 7
        %v374 = vsub.s32 %v371, %v373
        %v375 = vrot.slane %v368, %v374
        %v377 = vsel %vm256, %v375, 0.0
        %v379 = vlaneseq
        %v380 = vshrl.u32 %v379, 7
        %v381 = vsub.s32 0, %v380
        %v382 = vrot.slane %v377, %v381
        %v383 = vlaneseq
        %v384 = vshrl.u32 %v383, 7
        %v385 = vsub.s32 1, %v384
        %v386 = vrot.slane %v377, %v385
        %vm389 = vcmask 1040384
        %v390 = vsel %vm389, %v382, 0.0
        %v391 = vsel %vm389, %v386, 0.0
        %v392 = vadd.f32 %v390, %v391
        %393 = vadd.xlane.f32.xlu0 %v392
        %v394 = vpop.xlane.xlu0 %393
        %v395 = vrot.slane %v394, 4
        %v396 = vadd.f32 %v394, %v395
        %v397 = vrot.slane %v396, 2
        %v398 = vadd.f32 %v396, %v397
        %v399 = vrot.slane %v398, 1
        %v400 = vadd.f32 %v398, %v399
        %s401 = vtos %v400
        %v402 = vstv %s401
        %vm403 = vcmask 0
        %404 = vst.msk [vmem:[%s225] sm:$0x1] %vm403, %v402
        %p405 = scmp.lt.s32.totalorder %s23, 1
        %s406 = scalar_select %p405, %s23, 1
        %p407 = scmp.lt.s32.totalorder %s24, 0
        %s408 = scalar_select %p407, %s24, 0
        %s409 = sadd.s32 %s408, %s406
        %s410 = scalar_lea.vmem %s2, %s409
        // Predicated region
        $region37: #{tpu_custom_call.1} parent=27 // pred_check
          %p411 = pneg %p107
        $region38: #{tpu_custom_call.1} parent=27 // pred_check_branch
          %413 = sbr.rel (%p411) target = $region40
        $region39: #{tpu_custom_call.1} parent=27 // pred_region
          _
        $region40: #{tpu_custom_call.1} parent=27 // pred_fallthru
          _
      $region28: #{tpu_custom_call.1} parent=5 // pred_fallthru
        _
      %p414 = scmp.le.s32.totalorder 2, %s14
      // Predicated region
      $region41: #{tpu_custom_call.1} parent=5 // pred_check
        %p415 = pneg %p414
      $region42: #{tpu_custom_call.1} parent=5 // pred_check_branch
        %417 = sbr.rel (%p415) target = $region44
      $region43: #{tpu_custom_call.1} parent=5 // pred_region
        %s418 = ssub.s32 %s14, 2
        // Predicated region
        $region45: #{tpu_custom_call.1} parent=43 // pred_check
          %p419 = pneg %p113
        $region46: #{tpu_custom_call.1} parent=43 // pred_check_branch
          %421 = sbr.rel (%p419) target = $region48
        $region47: #{tpu_custom_call.1} parent=43 // pred_region
          %p422 = scmp.lt.s32.totalorder %s25, 1
          %s423 = scalar_select %p422, %s25, 1
          %p424 = scmp.lt.s32.totalorder %s26, 0
          %s425 = scalar_select %p424, %s26, 0
          %s426 = sadd.s32 %s425, %s423
          %s427 = scalar_lea.vmem %s2, %s426
        $region48: #{tpu_custom_call.1} parent=43 // pred_fallthru
          _
      $region44: #{tpu_custom_call.1} parent=5 // pred_fallthru
        _
    $region6: #{tpu_custom_call.1} parent=1 // loop_footer
      %s18 = sadd.s32 1, %s14
    $region7: #{tpu_custom_call.1} parent=1 // loop_footer_branch
      %13 = sbr.rel target = $region3
    $region8: #{tpu_custom_call.1} parent=1 // loop_exit
      _
    %428 = vsyncpa [#allocation3], 1
    %s429 = scalar_lea.sflag [#allocation3], 1
    %430 = vsyncpa %s429, 1
    %431 = vsyncpa [#allocation5], 1
    %s432 = scalar_lea.sflag [#allocation5], 1
    %433 = vsyncpa %s432, 1

</llo_original>
